<compile_context>
chip_gen: v7x
topology: tpu7x:2x2x1
jax: 0.10.0
libtpu: 0.0.40
codegen_flags: <defaults>
</compile_context>

<pallas_src>
import functools

import jax
import jax.numpy as jnp
from jax import lax
from jax.experimental import pallas as pl
from jax.experimental.pallas import tpu as pltpu


# ----------------------------------------------------------------------------
# Kernels
# ----------------------------------------------------------------------------
def _fc1_stats_kernel(x_ref, w1_ref, b1_ref,          # inputs
                      h_ref, sum_ref, sq_ref,         # outputs
                      acc_ref,                        # scratch
                      *, b_true, tile_b):
    """Pass 1: h = x @ W1t + b1 (K-tiled), plus full-batch sum / sum-of-squares."""
    b = pl.program_id(0)
    k = pl.program_id(1)
    nk = pl.num_programs(1)

    @pl.when(k == 0)
    def _init_acc():
        acc_ref[...] = jnp.zeros_like(acc_ref)

    @pl.when((b == 0) & (k == 0))
    def _init_stats():
        sum_ref[...] = jnp.zeros_like(sum_ref)
        sq_ref[...] = jnp.zeros_like(sq_ref)

    acc_ref[...] += jnp.dot(x_ref[...], w1_ref[...],
                            preferred_element_type=jnp.float32)

    @pl.when(k == nk - 1)
    def _finalize():
        h = acc_ref[...] + b1_ref[...].astype(jnp.float32)
        h_ref[...] = h.astype(h_ref.dtype)
        # Mask rows beyond the true batch so zero-padded rows (which still get
        # the bias) never enter the BatchNorm statistics.
        row = b * tile_b + lax.broadcasted_iota(jnp.int32, (tile_b, 1), 0)
        hm = jnp.where(row < b_true, h, 0.0)
        sum_ref[...] += jnp.sum(hm, axis=0, keepdims=True)
        sq_ref[...] += jnp.sum(hm * hm, axis=0, keepdims=True)


def _bn_relu_fc2_kernel(h_ref, sum_ref, sq_ref, gamma_ref, beta_ref,
                        w2_ref, b2_ref, o_ref, *, b_true, eps):
    """Pass 2: folded BatchNorm (training stats) -> ReLU -> fc2."""
    inv_b = 1.0 / float(b_true)
    mean = sum_ref[...] * inv_b
    var = jnp.maximum(sq_ref[...] * inv_b - mean * mean, 0.0)
    s = gamma_ref[...].astype(jnp.float32) * lax.rsqrt(var + eps)
    t = beta_ref[...].astype(jnp.float32) - mean * s
    a = jnp.maximum(h_ref[...] * s + t, 0.0)
    y = jnp.dot(a.astype(w2_ref.dtype), w2_ref[...],
                preferred_element_type=jnp.float32)
    o_ref[...] = (y + b2_ref[...].astype(jnp.float32)).astype(o_ref.dtype)


def _linear_kernel(x_ref, w_ref, b_ref, o_ref, acc_ref):
    """Single Linear layer, batch- and K-tiled with a resident f32 accumulator."""
    k = pl.program_id(1)
    nk = pl.num_programs(1)

    @pl.when(k == 0)
    def _init():
        acc_ref[...] = jnp.zeros_like(acc_ref)

    acc_ref[...] += jnp.dot(x_ref[...], w_ref[...],
                            preferred_element_type=jnp.float32)

    @pl.when(k == nk - 1)
    def _store():
        o_ref[...] = (acc_ref[...] + b_ref[...].astype(jnp.float32)).astype(o_ref.dtype)


# ----------------------------------------------------------------------------
# Wrapper
# ----------------------------------------------------------------------------
def _round_up(n, m):
    return ((n + m - 1) // m) * m


def classifier_forward(x, params, hidden_size=None, *, eps=1e-5):
    """params follow PyTorch shape conventions: W (out, in), b (out,)."""
    B = x.shape[0]
    x2d = x.reshape(B, -1)
    In = x2d.shape[1]
    out_dtype = x2d.dtype

    # --- tile / padding choices (lane-dense, 8x128-aligned everywhere) ---
    In_p = _round_up(In, 128)
    tile_b = min(256, _round_up(B, 8))
    B_p = _round_up(B, tile_b)
    nb = B_p // tile_b
    tile_k = next(t for t in (512, 256, 128) if In_p % t == 0)
    nk = In_p // tile_k

    x_p = jnp.pad(x2d, ((0, B_p - B), (0, In_p - In)))

    if hidden_size is None:
        w1, b1 = params["w1"], params["b1"]
        C = w1.shape[0]
        Cp = _round_up(C, 128)
        w1t = jnp.pad(w1.T, ((0, In_p - In), (0, Cp - C)))       # (In_p, Cp)
        b1p = jnp.pad(b1, (0, Cp - C)).reshape(1, Cp)

        y_p = pl.pallas_call(
            _linear_kernel,
            out_shape=jax.ShapeDtypeStruct((B_p, Cp), out_dtype),
            grid=(nb, nk),
            in_specs=[pl.BlockSpec((tile_b, tile_k), lambda i, k: (i, k)),
                      pl.BlockSpec((tile_k, Cp), lambda i, k: (k, 0)),
                      pl.BlockSpec((1, Cp), lambda i, k: (0, 0))],
            out_specs=pl.BlockSpec((tile_b, Cp), lambda i, k: (i, 0)),
            scratch_shapes=[pltpu.VMEM((tile_b, Cp), jnp.float32)],
            compiler_params=pltpu.CompilerParams(
                dimension_semantics=("parallel", "arbitrary")),
            cost_estimate=pl.CostEstimate(
                flops=2 * B_p * In_p * Cp,
                transcendentals=0,
                bytes_accessed=4 * (B_p * In_p + In_p * Cp + B_p * Cp)),
        )(x_p, w1t, b1p)
        return y_p[:B, :C]

    # --- hidden path: Linear -> BatchNorm1d(train) -> ReLU -> Linear ---
    w1, b1 = params["w1"], params["b1"]
    gamma, beta = params["gamma"], params["beta"]
    w2, b2 = params["w2"], params["b2"]
    H = w1.shape[0]
    C = w2.shape[0]
    Hp = _round_up(H, 128)
    Cp = _round_up(C, 128)

    w1t = jnp.pad(w1.T, ((0, In_p - In), (0, Hp - H)))            # (In_p, Hp)
    b1p = jnp.pad(b1, (0, Hp - H)).reshape(1, Hp)
    gp = jnp.pad(gamma, (0, Hp - H), constant_values=1.0).reshape(1, Hp)
    bp = jnp.pad(beta, (0, Hp - H)).reshape(1, Hp)
    w2t = jnp.pad(w2.T, ((0, Hp - H), (0, Cp - C)))               # (Hp, Cp)
    b2p = jnp.pad(b2, (0, Cp - C)).reshape(1, Cp)

    # Pass 1: fc1 + full-batch sum / sum-of-squares (cross-tile accumulators).
    h, ssum, ssq = pl.pallas_call(
        functools.partial(_fc1_stats_kernel, b_true=B, tile_b=tile_b),
        out_shape=(jax.ShapeDtypeStruct((B_p, Hp), jnp.float32),
                   jax.ShapeDtypeStruct((1, Hp), jnp.float32),
                   jax.ShapeDtypeStruct((1, Hp), jnp.float32)),
        grid=(nb, nk),
        in_specs=[pl.BlockSpec((tile_b, tile_k), lambda i, k: (i, k)),
                  pl.BlockSpec((tile_k, Hp), lambda i, k: (k, 0)),
                  pl.BlockSpec((1, Hp), lambda i, k: (0, 0))],
        out_specs=(pl.BlockSpec((tile_b, Hp), lambda i, k: (i, 0)),
                   pl.BlockSpec((1, Hp), lambda i, k: (0, 0)),
                   pl.BlockSpec((1, Hp), lambda i, k: (0, 0))),
        scratch_shapes=[pltpu.VMEM((tile_b, Hp), jnp.float32)],
        compiler_params=pltpu.CompilerParams(
            dimension_semantics=("arbitrary", "arbitrary")),
        cost_estimate=pl.CostEstimate(
            flops=2 * B_p * In_p * Hp,
            transcendentals=0,
            bytes_accessed=4 * (B_p * In_p + In_p * Hp + B_p * Hp + 2 * Hp)),
    )(x_p, w1t, b1p)

    # Pass 2: folded BN -> ReLU -> fc2 (batch axis fully parallel).
    y_p = pl.pallas_call(
        functools.partial(_bn_relu_fc2_kernel, b_true=B, eps=eps),
        out_shape=jax.ShapeDtypeStruct((B_p, Cp), out_dtype),
        grid=(nb,),
        in_specs=[pl.BlockSpec((tile_b, Hp), lambda i: (i, 0)),
                  pl.BlockSpec((1, Hp), lambda i: (0, 0)),
                  pl.BlockSpec((1, Hp), lambda i: (0, 0)),
                  pl.BlockSpec((1, Hp), lambda i: (0, 0)),
                  pl.BlockSpec((1, Hp), lambda i: (0, 0)),
                  pl.BlockSpec((Hp, Cp), lambda i: (0, 0)),
                  pl.BlockSpec((1, Cp), lambda i: (0, 0))],
        out_specs=pl.BlockSpec((tile_b, Cp), lambda i: (i, 0)),
        compiler_params=pltpu.CompilerParams(
            dimension_semantics=("parallel",)),
        cost_estimate=pl.CostEstimate(
            flops=2 * B_p * Hp * Cp,
            transcendentals=Hp,
            bytes_accessed=4 * (B_p * Hp + Hp * Cp + B_p * Cp + 4 * Hp)),
    )(h, ssum, ssq, gp, bp, w2t, b2p)
    return y_p[:B, :C]


# ----------------------------------------------------------------------------
# Deterministic parameter init (PyTorch-like uniform fan-in init)
# ----------------------------------------------------------------------------
def init_params(key, input_size, num_classes, hidden_size=None):
    if hidden_size is None:
        k1, k2 = jax.random.split(key, 2)
        bound = 1.0 / jnp.sqrt(input_size)
        return {
            "w1": jax.random.uniform(k1, (num_classes, input_size),
                                     jnp.float32, -bound, bound),
            "b1": jax.random.uniform(k2, (num_classes,),
                                     jnp.float32, -bound, bound),
        }
    k1, k2, k3, k4 = jax.random.split(key, 4)
    b1_bound = 1.0 / jnp.sqrt(input_size)
    b2_bound = 1.0 / jnp.sqrt(hidden_size)
    return {
        "w1": jax.random.uniform(k1, (hidden_size, input_size),
                                 jnp.float32, -b1_bound, b1_bound),
        "b1": jax.random.uniform(k2, (hidden_size,),
                                 jnp.float32, -b1_bound, b1_bound),
        "gamma": jnp.ones((hidden_size,), jnp.float32),
        "beta": jnp.zeros((hidden_size,), jnp.float32),
        "w2": jax.random.uniform(k3, (num_classes, hidden_size),
                                 jnp.float32, -b2_bound, b2_bound),
        "b2": jax.random.uniform(k4, (num_classes,),
                                 jnp.float32, -b2_bound, b2_bound),
    }


# ----------------------------------------------------------------------------
# Pure-JAX reference (PyTorch forward semantics, BN in training mode)
# ----------------------------------------------------------------------------
def _reference(x, params, hidden_size=None, eps=1e-5):
    B = x.shape[0]
    x2 = x.reshape(B, -1)
    if hidden_size is None:
        return x2 @ params["w1"].T + params["b1"]
    h = x2 @ params["w1"].T + params["b1"]
    mean = h.mean(axis=0, keepdims=True)
    var = ((h - mean) ** 2).mean(axis=0, keepdims=True)
    h = (h - mean) / jnp.sqrt(var + eps)
    h = h * params["gamma"] + params["beta"]
    h = jnp.maximum(h, 0.0)
    return h @ params["w2"].T + params["b2"]


# ----------------------------------------------------------------------------
if __name__ == "__main__":
    key = jax.random.PRNGKey(0)
    kx, kp1, kp2 = jax.random.split(key, 3)

    # x flattens from (B, C, H, W) = (2, 4, 16, 16) -> input_size 1024
    B, Cin, Hs, Ws = 2, 4, 16, 16
    input_size = Cin * Hs * Ws
    hidden_size = 32
    num_classes = 10

    x = jax.random.normal(kx, (B, Cin, Hs, Ws), jnp.float32)

    # Path 1: hidden_size given (Linear -> BN(train) -> ReLU -> Linear)
    params_h = init_params(kp1, input_size, num_classes, hidden_size)
    y_h = classifier_forward(x, params_h, hidden_size)
    jax.block_until_ready(y_h)
    assert y_h.shape == (B, num_classes)
    ref_h = _reference(x, params_h, hidden_size)
    assert jnp.allclose(y_h, ref_h, rtol=1e-3, atol=1e-3), "hidden path mismatch"

    # Path 2: hidden_size is None (single Linear)
    params_l = init_params(kp2, input_size, num_classes, None)
    y_l = classifier_forward(x, params_l, None)
    jax.block_until_ready(y_l)
    assert y_l.shape == (B, num_classes)
    ref_l = _reference(x, params_l, None)
    assert jnp.allclose(y_l, ref_l, rtol=1e-3, atol=1e-3), "linear path mismatch"

    print("KERNEL_OK")
</pallas_src>

<mosaic_0001>
module attributes {stable_mosaic.version = 11 : i64} {
  func.func @_fc1_stats_kernel(%arg0: i32, %arg1: i32, %arg2: memref<8x512xf32, #tpu.memory_space<vmem>>, %arg3: memref<512x128xf32, #tpu.memory_space<vmem>>, %arg4: memref<1x128xf32, #tpu.memory_space<vmem>>, %arg5: memref<8x128xf32, #tpu.memory_space<vmem>>, %arg6: memref<1x128xf32, #tpu.memory_space<vmem>>, %arg7: memref<1x128xf32, #tpu.memory_space<vmem>>, %arg8: memref<8x128xf32, #tpu.memory_space<vmem>>) attributes {dimension_semantics = [#tpu.dimension_semantics<arbitrary>, #tpu.dimension_semantics<arbitrary>], iteration_bounds = array<i64: 1, 2>, scalar_prefetch = 0 : i64, scratch_operands = 1 : i64, tpu.core_type = #tpu.core_type<tc>, window_params = [{transform_indices = @transform_0, window_bounds = array<i64: 8, 512>}, {transform_indices = @transform_1, window_bounds = array<i64: 512, 128>}, {pipeline_mode = #tpu.pipeline_mode<synchronous>, transform_indices = @transform_2, window_bounds = array<i64: 1, 128>}, {transform_indices = @transform_3, window_bounds = array<i64: 8, 128>}, {pipeline_mode = #tpu.pipeline_mode<synchronous>, transform_indices = @transform_4, window_bounds = array<i64: 1, 128>}, {pipeline_mode = #tpu.pipeline_mode<synchronous>, transform_indices = @transform_5, window_bounds = array<i64: 1, 128>}]} {
    %c0_i32 = arith.constant 0 : i32
    %0 = arith.cmpi eq, %arg1, %c0_i32 : i32
    %1 = arith.extui %0 : i1 to i32
    %c0_i32_0 = arith.constant 0 : i32
    %2 = arith.cmpi ne, %1, %c0_i32_0 : i32
    scf.if %2 {
      %cst_12 = arith.constant 0.000000e+00 : f32
      %17 = vector.broadcast %cst_12 : f32 to vector<8x128xf32>
      %c0_13 = arith.constant 0 : index
      %c0_14 = arith.constant 0 : index
      %18 = vector.load %arg8[%c0_13, %c0_14] : memref<8x128xf32, #tpu.memory_space<vmem>>, vector<8x128xf32>
      tpu.vector_store %arg8[%c0_13, %c0_14], %17 {strides = array<i32>} : memref<8x128xf32, #tpu.memory_space<vmem>>, vector<8x128xf32>,
    } else {
    }
    %c0_i32_1 = arith.constant 0 : i32
    %3 = arith.cmpi eq, %arg0, %c0_i32_1 : i32
    %c0_i32_2 = arith.constant 0 : i32
    %4 = arith.cmpi eq, %arg1, %c0_i32_2 : i32
    %5 = arith.andi %3, %4 : i1
    %6 = arith.extui %5 : i1 to i32
    %c0_i32_3 = arith.constant 0 : i32
    %7 = arith.cmpi ne, %6, %c0_i32_3 : i32
    scf.if %7 {
      %cst_12 = arith.constant 0.000000e+00 : f32
      %17 = vector.broadcast %cst_12 : f32 to vector<1x128xf32>
      %c0_13 = arith.constant 0 : index
      %c0_14 = arith.constant 0 : index
      %18 = vector.load %arg6[%c0_13, %c0_14] : memref<1x128xf32, #tpu.memory_space<vmem>>, vector<1x128xf32>
      tpu.vector_store %arg6[%c0_13, %c0_14], %17 {strides = array<i32>} : memref<1x128xf32, #tpu.memory_space<vmem>>, vector<1x128xf32>,
      %cst_15 = arith.constant 0.000000e+00 : f32
      %19 = vector.broadcast %cst_15 : f32 to vector<1x128xf32>
      %c0_16 = arith.constant 0 : index
      %c0_17 = arith.constant 0 : index
      %20 = vector.load %arg7[%c0_16, %c0_17] : memref<1x128xf32, #tpu.memory_space<vmem>>, vector<1x128xf32>
      tpu.vector_store %arg7[%c0_16, %c0_17], %19 {strides = array<i32>} : memref<1x128xf32, #tpu.memory_space<vmem>>, vector<1x128xf32>,
    } else {
    }
    %c0 = arith.constant 0 : index
    %c0_4 = arith.constant 0 : index
    %8 = vector.load %arg8[%c0, %c0_4] : memref<8x128xf32, #tpu.memory_space<vmem>>, vector<8x128xf32>
    %c0_5 = arith.constant 0 : index
    %c0_6 = arith.constant 0 : index
    %9 = vector.load %arg2[%c0_5, %c0_6] : memref<8x512xf32, #tpu.memory_space<vmem>>, vector<8x512xf32>
    %c0_7 = arith.constant 0 : index
    %c0_8 = arith.constant 0 : index
    %10 = vector.load %arg3[%c0_7, %c0_8] : memref<512x128xf32, #tpu.memory_space<vmem>>, vector<512x128xf32>
    %cst = arith.constant dense<0.000000e+00> : vector<8x128xf32>
    %11 = tpu.matmul %9, %10, %cst {dimension_numbers = #tpu.dot_dimension_numbers<[1], [0], [0], [1], [0, 0, 1, 1], [], []>} : vector<8x512xf32>, vector<512x128xf32>, vector<8x128xf32> -> vector<8x128xf32>
    %12 = arith.addf %8, %11 : vector<8x128xf32>
    %c0_9 = arith.constant 0 : index
    %c0_10 = arith.constant 0 : index
    %13 = vector.load %arg8[%c0_9, %c0_10] : memref<8x128xf32, #tpu.memory_space<vmem>>, vector<8x128xf32>
    tpu.vector_store %arg8[%c0_9, %c0_10], %12 {strides = array<i32>} : memref<8x128xf32, #tpu.memory_space<vmem>>, vector<8x128xf32>,
    %c1_i32 = arith.constant 1 : i32
    %14 = arith.cmpi eq, %arg1, %c1_i32 : i32
    %15 = arith.extui %14 : i1 to i32
    %c0_i32_11 = arith.constant 0 : i32
    %16 = arith.cmpi ne, %15, %c0_i32_11 : i32
    scf.if %16 {
      %c0_12 = arith.constant 0 : index
      %c0_13 = arith.constant 0 : index
      %17 = vector.load %arg8[%c0_12, %c0_13] : memref<8x128xf32, #tpu.memory_space<vmem>>, vector<8x128xf32>
      %c0_14 = arith.constant 0 : index
      %c0_15 = arith.constant 0 : index
      %18 = vector.load %arg4[%c0_14, %c0_15] : memref<1x128xf32, #tpu.memory_space<vmem>>, vector<1x128xf32>
      %19 = vector.broadcast %18 : vector<1x128xf32> to vector<8x128xf32>
      %20 = arith.addf %17, %19 : vector<8x128xf32>
      %c0_16 = arith.constant 0 : index
      %c0_17 = arith.constant 0 : index
      %21 = vector.load %arg5[%c0_16, %c0_17] : memref<8x128xf32, #tpu.memory_space<vmem>>, vector<8x128xf32>
      tpu.vector_store %arg5[%c0_16, %c0_17], %20 {strides = array<i32>} : memref<8x128xf32, #tpu.memory_space<vmem>>, vector<8x128xf32>,
      %c8_i32 = arith.constant 8 : i32
      %22 = arith.muli %arg0, %c8_i32 : i32
      %23 = tpu.iota {dimensions = array<i32: 0>} : vector<8x1xi32>
      %24 = vector.broadcast %22 : i32 to vector<8x1xi32>
      %25 = arith.addi %24, %23 : vector<8x1xi32>
      %c2_i32 = arith.constant 2 : i32
      %26 = vector.broadcast %c2_i32 : i32 to vector<8x1xi32>
      %27 = arith.cmpi slt, %25, %26 : vector<8x1xi32>
      %cst_18 = arith.constant 0.000000e+00 : f32
      %28 = vector.shape_cast %27 : vector<8x1xi1> to vector<8x1xi1>
      %29 = vector.broadcast %28 : vector<8x1xi1> to vector<8x128xi1>
      %30 = vector.broadcast %cst_18 : f32 to vector<8x128xf32>
      %31 = arith.select %29, %20, %30 : vector<8x128xi1>, vector<8x128xf32>
      %c0_19 = arith.constant 0 : index
      %c0_20 = arith.constant 0 : index
      %32 = vector.load %arg6[%c0_19, %c0_20] : memref<1x128xf32, #tpu.memory_space<vmem>>, vector<1x128xf32>
      %cst_21 = arith.constant dense<0.000000e+00> : vector<128xf32>
      %33 = vector.multi_reduction <add>, %31, %cst_21 [0] : vector<8x128xf32> to vector<128xf32>
      %34 = vector.shape_cast %33 : vector<128xf32> to vector<1x128xf32>
      %35 = arith.addf %32, %34 : vector<1x128xf32>
      %c0_22 = arith.constant 0 : index
      %c0_23 = arith.constant 0 : index
      %36 = vector.load %arg6[%c0_22, %c0_23] : memref<1x128xf32, #tpu.memory_space<vmem>>, vector<1x128xf32>
      tpu.vector_store %arg6[%c0_22, %c0_23], %35 {strides = array<i32>} : memref<1x128xf32, #tpu.memory_space<vmem>>, vector<1x128xf32>,
      %c0_24 = arith.constant 0 : index
      %c0_25 = arith.constant 0 : index
      %37 = vector.load %arg7[%c0_24, %c0_25] : memref<1x128xf32, #tpu.memory_space<vmem>>, vector<1x128xf32>
      %38 = arith.mulf %31, %31 : vector<8x128xf32>
      %cst_26 = arith.constant dense<0.000000e+00> : vector<128xf32>
      %39 = vector.multi_reduction <add>, %38, %cst_26 [0] : vector<8x128xf32> to vector<128xf32>
      %40 = vector.shape_cast %39 : vector<128xf32> to vector<1x128xf32>
      %41 = arith.addf %37, %40 : vector<1x128xf32>
      %c0_27 = arith.constant 0 : index
      %c0_28 = arith.constant 0 : index
      %42 = vector.load %arg7[%c0_27, %c0_28] : memref<1x128xf32, #tpu.memory_space<vmem>>, vector<1x128xf32>
      tpu.vector_store %arg7[%c0_27, %c0_28], %41 {strides = array<i32>} : memref<1x128xf32, #tpu.memory_space<vmem>>, vector<1x128xf32>,
    } else {
    }
    return
  }
  func.func @transform_0(%arg0: i32, %arg1: i32) -> (i32, i32) {
    %c0_i32 = arith.constant 0 : i32
    return %arg0, %arg1 : i32, i32
  }
  func.func @transform_1(%arg0: i32, %arg1: i32) -> (i32, i32) {
    %c0_i32 = arith.constant 0 : i32
    %c0_i32_0 = arith.constant 0 : i32
    return %arg1, %c0_i32 : i32, i32
  }
  func.func @transform_2(%arg0: i32, %arg1: i32) -> (i32, i32) {
    %c0_i32 = arith.constant 0 : i32
    %c0_i32_0 = arith.constant 0 : i32
    %c0_i32_1 = arith.constant 0 : i32
    return %c0_i32, %c0_i32_0 : i32, i32
  }
  func.func @transform_3(%arg0: i32, %arg1: i32) -> (i32, i32) {
    %c0_i32 = arith.constant 0 : i32
    %c0_i32_0 = arith.constant 0 : i32
    return %arg0, %c0_i32 : i32, i32
  }
  func.func @transform_4(%arg0: i32, %arg1: i32) -> (i32, i32) {
    %c0_i32 = arith.constant 0 : i32
    %c0_i32_0 = arith.constant 0 : i32
    %c0_i32_1 = arith.constant 0 : i32
    return %c0_i32, %c0_i32_0 : i32, i32
  }
  func.func @transform_5(%arg0: i32, %arg1: i32) -> (i32, i32) {
    %c0_i32 = arith.constant 0 : i32
    %c0_i32_0 = arith.constant 0 : i32
    %c0_i32_1 = arith.constant 0 : i32
    return %c0_i32, %c0_i32_0 : i32, i32
  }
}

</mosaic_0001>

<llo_original>
// kernel: tpu_custom_call.1
$region0: #{tpu_custom_call.1}
  #allocation0 [shape = 'u32[]', space=smem, size = 0x4, offset = 0x4, fixed_abs, tag = 'smem constant byte address 0x4 - core index']
  #allocation1 [shape = 'u32[144,128]{1,0:T(1,128)}', space=vmem, size = 0x12000, scoped, tag = 'internal scratch']
  #allocation2 [shape = 'f32[8,128]{1,0:T(8,128)}', space=vmem, size = 0x1000, scoped, tag = 'scratch operand']
  %s0 = inlined_call_operand.hbm [shape: f32[8,1024], index: 0, kind: input, shape index: {}]
  %s1 = inlined_call_operand.hbm [shape: f32[1024,128], index: 1, kind: input, shape index: {}]
  %s2 = inlined_call_operand.vmem [shape: f32[1,128], index: 2, kind: input, shape index: {}]
  %s3 = inlined_call_operand.hbm [shape: f32[8,128], index: 3, kind: output, shape index: {0}]
  %s4 = inlined_call_operand.hbm [shape: f32[1,128], index: 4, kind: output, shape index: {1}]
  %s5 = inlined_call_operand.hbm [shape: f32[1,128], index: 5, kind: output, shape index: {2}]
  %6 = xla_tuple %s3, %s4, %s5
  %s7 = sld [smem:[#allocation0]]
  $region81: #{tpu_custom_call.1} parent=0
    _
  %s9 = ssub.s32 1, %s7
  %s10 = scalar_select 0, %s9, %s7
  $region1: #{tpu_custom_call.1} parent=0
    #allocation3 [shape = 'u8[32768]{0}', space=vmem, size = 0x8000, scoped, tag = 'input window, operand 0']
    #allocation4 [shape = 's32[2]{0}', space=sflag, size = 0x8, scoped, tag = 'scoped memory for tpu_custom_call.1']
    #allocation5 [shape = 's32[2]{0}', space=sflag, size = 0x8, scoped, tag = 'scoped memory for tpu_custom_call.1']
    #allocation6 [shape = 'u8[524288]{0}', space=vmem, size = 0x80000, scoped, tag = 'input window, operand 1']
    #allocation7 [shape = 's32[2]{0}', space=sflag, size = 0x8, scoped, tag = 'scoped memory for tpu_custom_call.1']
    #allocation8 [shape = 'u8[4096]{0}', space=vmem, size = 0x1000, scoped, tag = 'output window, operand 0, single buffered']
    #allocation9 [shape = 'u8[512]{0}', space=vmem, size = 0x400, scoped, tag = 'output window, operand 1, single buffered']
    #allocation10 [shape = 's32[1]{0}', space=sflag, size = 0x4, scoped, tag = 'scoped memory for tpu_custom_call.1']
    #allocation11 [shape = 'u8[512]{0}', space=vmem, size = 0x400, scoped, tag = 'output window, operand 2, single buffered']
    %11 = vsyncpa [#allocation4], 0
    %s12 = scalar_lea.sflag [#allocation4], 1
    %13 = vsyncpa %s12, 0
    %14 = vsyncpa [#allocation7], 0
    %s15 = scalar_lea.sflag [#allocation7], 1
    %16 = vsyncpa %s15, 0
    %17 = vsyncpa [#allocation5], 0
    %18 = vsyncpa [#allocation10], 0
    loop: start=0, step=1, limit=4
    $region2: #{tpu_custom_call.1} parent=1 // loop_pre_header
      _
    $region3: #{tpu_custom_call.1} parent=1 // loop_header
      %s20 = sphi 0, %s24
      %p21 = scmp.ge.s32.totalorder %s20, 4
      %s27 = sphi 0, %s39
      %s28 = sphi 0, %s35
      %s29 = sphi 0, %s27
      %s30 = sphi 0, %s28
      %s31 = sphi 0, %s29
      %s32 = sphi 0, %s30
      %s44 = sphi 0, %s46
      %s47 = sphi 0, %s44
      %s48 = sphi 0, %s47
      %s64 = sphi 0, %s48
      %s70 = sphi 0, %s72
      %s73 = sphi 0, %s70
      %s74 = sphi 0, %s73
      %s90 = sphi 0, %s74
      %s94 = sphi 0, %s94
      %s96 = sphi 0, %s94
      %s97 = sphi 0, %s96
      %s111 = sphi 0, %s97
      %s117 = sphi 0, %s119
      %s120 = sphi 0, %s117
      %s121 = sphi 0, %s120
      %s137 = sphi 0, %s121
      %s141 = sphi 0, %s141
      %s143 = sphi 0, %s141
      %s144 = sphi 0, %s143
      %s158 = sphi 0, %s144
      %s162 = sphi 0, %s162
      %s164 = sphi 0, %s162
      %s165 = sphi 0, %s164
      %s179 = sphi 0, %s165
    $region4: #{tpu_custom_call.1} parent=1 // loop_header_branch
      %23 = sbr.rel (%p21) target = $region8
    $region5: #{tpu_custom_call.1} parent=1 // loop_body
      %s25 = ssub.s32 %s20, 1
      %s26 = ssub.s32 %s20, 2
      %s33 = sadd.s32 1, %s28
      %p34 = scmp.ge.s32.totalorder %s33, 2
      %s35 = scalar_select %p34, 0, %s33
      %s36 = sadd.s32 1, %s27
      %s37 = scalar_select %p34, %s36, %s27
      %p38 = scmp.ge.s32.totalorder %s37, 1
      %s39 = scalar_select %p38, 0, %s37
      %s40 = ssub.s32 %s27, %s39
      %s41 = ssub.s32 %s28, %s35
      %s42 = sor.u32 %s40, %s41
      %p43 = scmp.eq.s32.totalorder %s42, 0
      %s45 = sadd.s32 %s44, 1
      %s46 = scalar_select %p43, %s44, %s45
      %p49 = pneg %p43
      %p50 = scmp.eq.s32.totalorder %s20, 1
      %p51 = por %p49, %p50
      %p52 = scmp.ne.s32.totalorder %s44, %s47
      %p53 = scmp.eq.s32.totalorder %s20, 0
      %p54 = por %p52, %p53
      %p55 = scmp.ne.s32.totalorder %s44, %s47
      %p56 = scmp.eq.s32.totalorder %s25, 1
      %p57 = por %p55, %p56
      %p58 = scmp.ne.s32.totalorder %s47, %s48
      %p59 = scmp.eq.s32.totalorder %s25, 0
      %p60 = por %p58, %p59
      %p61 = scmp.ne.s32.totalorder %s47, %s48
      %p62 = scmp.eq.s32.totalorder %s26, 1
      %p63 = por %p61, %p62
      %p65 = scmp.ne.s32.totalorder %s48, %s64
      %p66 = scmp.eq.s32.totalorder %s26, 0
      %p67 = por %p65, %p66
      %s68 = ssub.s32 %s28, %s35
      %p69 = scmp.eq.s32.totalorder %s68, 0
      %s71 = sadd.s32 %s70, 1
      %s72 = scalar_select %p69, %s70, %s71
      %p75 = pneg %p69
      %p76 = scmp.eq.s32.totalorder %s20, 1
      %p77 = por %p75, %p76
      %p78 = scmp.ne.s32.totalorder %s70, %s73
      %p79 = scmp.eq.s32.totalorder %s20, 0
      %p80 = por %p78, %p79
      %p81 = scmp.ne.s32.totalorder %s70, %s73
      %p82 = scmp.eq.s32.totalorder %s25, 1
      %p83 = por %p81, %p82
      %p84 = scmp.ne.s32.totalorder %s73, %s74
      %p85 = scmp.eq.s32.totalorder %s25, 0
      %p86 = por %p84, %p85
      %p87 = scmp.ne.s32.totalorder %s73, %s74
      %p88 = scmp.eq.s32.totalorder %s26, 1
      %p89 = por %p87, %p88
      %p91 = scmp.ne.s32.totalorder %s74, %s90
      %p92 = scmp.eq.s32.totalorder %s26, 0
      %p93 = por %p91, %p92
      %s95 = sadd.s32 %s94, 1
      %p98 = scmp.eq.s32.totalorder %s20, 1
      %p99 = scmp.ne.s32.totalorder %s94, %s96
      %p100 = scmp.eq.s32.totalorder %s20, 0
      %p101 = por %p99, %p100
      %p102 = scmp.ne.s32.totalorder %s94, %s96
      %p103 = scmp.eq.s32.totalorder %s25, 1
      %p104 = por %p102, %p103
      %p105 = scmp.ne.s32.totalorder %s96, %s97
      %p106 = scmp.eq.s32.totalorder %s25, 0
      %p107 = por %p105, %p106
      %p108 = scmp.ne.s32.totalorder %s96, %s97
      %p109 = scmp.eq.s32.totalorder %s26, 1
      %p110 = por %p108, %p109
      %p112 = scmp.ne.s32.totalorder %s97, %s111
      %p113 = scmp.eq.s32.totalorder %s26, 0
      %p114 = por %p112, %p113
      %s115 = ssub.s32 %s27, %s39
      %p116 = scmp.eq.s32.totalorder %s115, 0
      %s118 = sadd.s32 %s117, 1
      %s119 = scalar_select %p116, %s117, %s118
      %p122 = pneg %p116
      %p123 = scmp.eq.s32.totalorder %s20, 1
      %p124 = por %p122, %p123
      %p125 = scmp.ne.s32.totalorder %s117, %s120
      %p126 = scmp.eq.s32.totalorder %s20, 0
      %p127 = por %p125, %p126
      %p128 = scmp.ne.s32.totalorder %s117, %s120
      %p129 = scmp.eq.s32.totalorder %s25, 1
      %p130 = por %p128, %p129
      %p131 = scmp.ne.s32.totalorder %s120, %s121
      %p132 = scmp.eq.s32.totalorder %s25, 0
      %p133 = por %p131, %p132
      %p134 = scmp.ne.s32.totalorder %s120, %s121
      %p135 = scmp.eq.s32.totalorder %s26, 1
      %p136 = por %p134, %p135
      %p138 = scmp.ne.s32.totalorder %s121, %s137
      %p139 = scmp.eq.s32.totalorder %s26, 0
      %p140 = por %p138, %p139
      %s142 = sadd.s32 %s141, 1
      %p145 = scmp.eq.s32.totalorder %s20, 1
      %p146 = scmp.ne.s32.totalorder %s141, %s143
      %p147 = scmp.eq.s32.totalorder %s20, 0
      %p148 = por %p146, %p147
      %p149 = scmp.ne.s32.totalorder %s141, %s143
      %p150 = scmp.eq.s32.totalorder %s25, 1
      %p151 = por %p149, %p150
      %p152 = scmp.ne.s32.totalorder %s143, %s144
      %p153 = scmp.eq.s32.totalorder %s25, 0
      %p154 = por %p152, %p153
      %p155 = scmp.ne.s32.totalorder %s143, %s144
      %p156 = scmp.eq.s32.totalorder %s26, 1
      %p157 = por %p155, %p156
      %p159 = scmp.ne.s32.totalorder %s144, %s158
      %p160 = scmp.eq.s32.totalorder %s26, 0
      %p161 = por %p159, %p160
      %s163 = sadd.s32 %s162, 1
      %p166 = scmp.eq.s32.totalorder %s20, 1
      %p167 = scmp.ne.s32.totalorder %s162, %s164
      %p168 = scmp.eq.s32.totalorder %s20, 0
      %p169 = por %p167, %p168
      %p170 = scmp.ne.s32.totalorder %s162, %s164
      %p171 = scmp.eq.s32.totalorder %s25, 1
      %p172 = por %p170, %p171
      %p173 = scmp.ne.s32.totalorder %s164, %s165
      %p174 = scmp.eq.s32.totalorder %s25, 0
      %p175 = por %p173, %p174
      %p176 = scmp.ne.s32.totalorder %s164, %s165
      %p177 = scmp.eq.s32.totalorder %s26, 1
      %p178 = por %p176, %p177
      %p180 = scmp.ne.s32.totalorder %s165, %s179
      %p181 = scmp.eq.s32.totalorder %s26, 0
      %p182 = por %p180, %p181
      %p183 = scmp.le.s32.totalorder 1, %s20
      %p184 = scmp.lt.s32.totalorder %s20, 3
      %p185 = pnand %p183, %p184
      %p186 = pneg %p185
      // Predicated region
      $region9: #{tpu_custom_call.1} parent=5 // pred_check
        _
      $region10: #{tpu_custom_call.1} parent=5 // pred_check_branch
        %188 = sbr.rel (%p185) target = $region12
      $region11: #{tpu_custom_call.1} parent=5 // pred_region
        %s189 = ssub.s32 %s20, 1
        // Predicated region
        $region13: #{tpu_custom_call.1} parent=11 // pred_check
          %p190 = pneg %p107
        $region14: #{tpu_custom_call.1} parent=11 // pred_check_branch
          %192 = sbr.rel (%p190) target = $region16
        $region15: #{tpu_custom_call.1} parent=11 // pred_region
          _
        $region16: #{tpu_custom_call.1} parent=11 // pred_fallthru
          _
      $region12: #{tpu_custom_call.1} parent=5 // pred_fallthru
        _
      %p193 = scmp.lt.s32.totalorder %s20, 2
      // Predicated region
      $region17: #{tpu_custom_call.1} parent=5 // pred_check
        %p194 = pneg %p193
      $region18: #{tpu_custom_call.1} parent=5 // pred_check_branch
        %196 = sbr.rel (%p194) target = $region20
      $region19: #{tpu_custom_call.1} parent=5 // pred_region
        // Predicated region
        $region21: #{tpu_custom_call.1} parent=19 // pred_check
          %p197 = pneg %p54
        $region22: #{tpu_custom_call.1} parent=19 // pred_check_branch
          %199 = sbr.rel (%p197) target = $region24
        $region23: #{tpu_custom_call.1} parent=19 // pred_region
          %s200 = sand.u32 %s44, 1
          %s201 = scalar_lea.sflag [#allocation4], %s200
          %s202 = sand.u32 %s44, 1
          %s203 = smul.addr %s202, 32
          %s204 = scalar_lea.vmem [#allocation3], %s203
          %s205 = smul.u32 4, %s28
          %s207 = ssub.s32 512, 512
          %208 = vsyncadd %s201, %s207
          %s209 = smul.addr %s27, 8
          %s210 = sadd.s32 %s205, %s209
          %s211 = smul.addr %s210, 128
          %s212 = scalar_lea.hbm %s0, %s211
          %s214 = sshll.u32 %s204, 4
          %s215 = int_to_ptr.vmem [resolvable:$true] %s214
          %217 = dma.hbm_to_vmem [thread:$0]  %s212, 512, %s215, %s201
        $region24: #{tpu_custom_call.1} parent=19 // pred_fallthru
          _
        // Predicated region
        $region25: #{tpu_custom_call.1} parent=19 // pred_check
          %p218 = pneg %p80
        $region26: #{tpu_custom_call.1} parent=19 // pred_check_branch
          %220 = sbr.rel (%p218) target = $region28
        $region27: #{tpu_custom_call.1} parent=19 // pred_region
          %s221 = sand.u32 %s70, 1
          %s222 = scalar_lea.sflag [#allocation7], %s221
          %s223 = sand.u32 %s70, 1
          %s224 = smul.addr %s223, 512
          %s225 = scalar_lea.vmem [#allocation6], %s224
          %s226 = smul.u32 64, %s28
          %s228 = ssub.s32 8192, 8192
          %229 = vsyncadd %s222, %s228
          %s230 = smul.addr %s226, 128
          %s231 = scalar_lea.hbm %s1, %s230
          %s232 = sshll.u32 %s225, 4
          %s233 = int_to_ptr.vmem [resolvable:$true] %s232
          %238 = dma.hbm_to_vmem [thread:$0]  %s231, 8192, %s233, %s222, 128, 128, 8
        $region28: #{tpu_custom_call.1} parent=19 // pred_fallthru
          _
      $region20: #{tpu_custom_call.1} parent=5 // pred_fallthru
        _
      %p239 = scmp.le.s32.totalorder 1, %s20
      %p240 = scmp.lt.s32.totalorder %s20, 3
      %p241 = pnand %p239, %p240
      %p242 = pneg %p241
      // Predicated region
      $region29: #{tpu_custom_call.1} parent=5 // pred_check
        _
      $region30: #{tpu_custom_call.1} parent=5 // pred_check_branch
        %244 = sbr.rel (%p241) target = $region32
      $region31: #{tpu_custom_call.1} parent=5 // pred_region
        %s245 = ssub.s32 %s20, 1
        %s246 = sand.u32 %s47, 1
        %s247 = scalar_lea.sflag [#allocation4], %s246
        %s248 = sand.u32 %s47, 1
        %s249 = smul.addr %s248, 32
        %s250 = scalar_lea.vmem [#allocation3], %s249
        // Predicated region
        $region33: #{tpu_custom_call.1} parent=31 // pred_check
          %p251 = pneg %p60
        $region34: #{tpu_custom_call.1} parent=31 // pred_check_branch
          %253 = sbr.rel (%p251) target = $region36
        $region35: #{tpu_custom_call.1} parent=31 // pred_region
          %254 = dma.done %s247, 512
        $region36: #{tpu_custom_call.1} parent=31 // pred_fallthru
          _
        %s255 = sand.u32 %s73, 1
        %s256 = scalar_lea.sflag [#allocation7], %s255
        %s257 = sand.u32 %s73, 1
        %s258 = smul.addr %s257, 512
        %s259 = scalar_lea.vmem [#allocation6], %s258
        // Predicated region
        $region37: #{tpu_custom_call.1} parent=31 // pred_check
          %p260 = pneg %p86
        $region38: #{tpu_custom_call.1} parent=31 // pred_check_branch
          %262 = sbr.rel (%p260) target = $region40
        $region39: #{tpu_custom_call.1} parent=31 // pred_region
          %263 = dma.done %s256, 8192
        $region40: #{tpu_custom_call.1} parent=31 // pred_fallthru
          _
        %s264 = sand.u32 %s47, 1
        %s265 = scalar_lea.sflag [#allocation4], %s264
        %s266 = sand.u32 %s47, 1
        %s267 = smul.addr %s266, 32
        %s268 = scalar_lea.vmem [#allocation3], %s267
        %p269 = pneg %p60
        %p270 = pneg %p57
        %s271 = sand.u32 %s73, 1
        %s272 = scalar_lea.sflag [#allocation7], %s271
        %s273 = sand.u32 %s73, 1
        %s274 = smul.addr %s273, 512
        %s275 = scalar_lea.vmem [#allocation6], %s274
        %p276 = pneg %p86
        %p277 = pneg %p83
        %p278 = pneg %p107
        %p279 = pneg %p104
        %p280 = pneg %p133
        %p281 = pneg %p130
        %p282 = pneg %p154
        %p283 = pneg %p151
        %p284 = pneg %p175
        %p285 = pneg %p172
        %s286 = smul.u32 4, %s30
        %s287 = smul.u32 64, %s30
        %p288 = scmp.eq.s32.totalorder %s30, 0
        // Predicated region
        $region41: #{tpu_custom_call.1} parent=31 // pred_check
          %p289 = pneg %p288
        $region42: #{tpu_custom_call.1} parent=31 // pred_check_branch
          %291 = sbr.rel (%p289) target = $region44
        $region43: #{tpu_custom_call.1} parent=31 // pred_region
          %292 = vst [vmem:[#allocation2] sm:$0xff] 0.0
        $region44: #{tpu_custom_call.1} parent=31 // pred_fallthru
          _
        %p293 = scmp.eq.s32.totalorder %s29, 0
        %p294 = pnand %p293, %p288
        %p295 = pneg %p294
        // Predicated region
        $region45: #{tpu_custom_call.1} parent=31 // pred_check
          _
        $region46: #{tpu_custom_call.1} parent=31 // pred_check_branch
          %297 = sbr.rel (%p294) target = $region48
        $region47: #{tpu_custom_call.1} parent=31 // pred_region
          %298 = vst [vmem:[#allocation9] sm:$0x1] 0.0
          %299 = vst [vmem:[#allocation11] sm:$0x1] 0.0
        $region48: #{tpu_custom_call.1} parent=31 // pred_fallthru
          _
        %v300 = vld [vmem:[#allocation2] sm:$0xff]
        %v301 = vld [vmem:[%s250] sm:$0xff]
        %v302 = vld [vmem:[%s250 + $0x8] sm:$0xff]
        %v303 = vld [vmem:[%s250 + $0x10] sm:$0xff]
        %v304 = vld [vmem:[%s250 + $0x18] sm:$0xff]
        %v305 = vld [vmem:[%s259] sm:$0xff]
        %v306 = vld [vmem:[%s259 + $0x8] sm:$0xff]
        %v307 = vld [vmem:[%s259 + $0x10] sm:$0xff]
        %v308 = vld [vmem:[%s259 + $0x18] sm:$0xff]
        %v309 = vld [vmem:[%s259 + $0x20] sm:$0xff]
        %v310 = vld [vmem:[%s259 + $0x28] sm:$0xff]
        %v311 = vld [vmem:[%s259 + $0x30] sm:$0xff]
        %v312 = vld [vmem:[%s259 + $0x38] sm:$0xff]
        %v313 = vld [vmem:[%s259 + $0x40] sm:$0xff]
        %v314 = vld [vmem:[%s259 + $0x48] sm:$0xff]
        %v315 = vld [vmem:[%s259 + $0x50] sm:$0xff]
        %v316 = vld [vmem:[%s259 + $0x58] sm:$0xff]
        %v317 = vld [vmem:[%s259 + $0x60] sm:$0xff]
        %v318 = vld [vmem:[%s259 + $0x68] sm:$0xff]
        %v319 = vld [vmem:[%s259 + $0x70] sm:$0xff]
        %v320 = vld [vmem:[%s259 + $0x78] sm:$0xff]
        %v321 = vld [vmem:[%s259 + $0x80] sm:$0xff]
        %v322 = vld [vmem:[%s259 + $0x88] sm:$0xff]
        %v323 = vld [vmem:[%s259 + $0x90] sm:$0xff]
        %v324 = vld [vmem:[%s259 + $0x98] sm:$0xff]
        %v325 = vld [vmem:[%s259 + $0xa0] sm:$0xff]
        %v326 = vld [vmem:[%s259 + $0xa8] sm:$0xff]
        %v327 = vld [vmem:[%s259 + $0xb0] sm:$0xff]
        %v328 = vld [vmem:[%s259 + $0xb8] sm:$0xff]
        %v329 = vld [vmem:[%s259 + $0xc0] sm:$0xff]
        %v330 = vld [vmem:[%s259 + $0xc8] sm:$0xff]
        %v331 = vld [vmem:[%s259 + $0xd0] sm:$0xff]
        %v332 = vld [vmem:[%s259 + $0xd8] sm:$0xff]
        %v333 = vld [vmem:[%s259 + $0xe0] sm:$0xff]
        %v334 = vld [vmem:[%s259 + $0xe8] sm:$0xff]
        %v335 = vld [vmem:[%s259 + $0xf0] sm:$0xff]
        %v336 = vld [vmem:[%s259 + $0xf8] sm:$0xff]
        %v337 = vld [vmem:[%s259 + $0x100] sm:$0xff]
        %v338 = vld [vmem:[%s259 + $0x108] sm:$0xff]
        %v339 = vld [vmem:[%s259 + $0x110] sm:$0xff]
        %v340 = vld [vmem:[%s259 + $0x118] sm:$0xff]
        %v341 = vld [vmem:[%s259 + $0x120] sm:$0xff]
        %v342 = vld [vmem:[%s259 + $0x128] sm:$0xff]
        %v343 = vld [vmem:[%s259 + $0x130] sm:$0xff]
        %v344 = vld [vmem:[%s259 + $0x138] sm:$0xff]
        %v345 = vld [vmem:[%s259 + $0x140] sm:$0xff]
        %v346 = vld [vmem:[%s259 + $0x148] sm:$0xff]
        %v347 = vld [vmem:[%s259 + $0x150] sm:$0xff]
        %v348 = vld [vmem:[%s259 + $0x158] sm:$0xff]
        %v349 = vld [vmem:[%s259 + $0x160] sm:$0xff]
        %v350 = vld [vmem:[%s259 + $0x168] sm:$0xff]
        %v351 = vld [vmem:[%s259 + $0x170] sm:$0xff]
        %v352 = vld [vmem:[%s259 + $0x178] sm:$0xff]
        %v353 = vld [vmem:[%s259 + $0x180] sm:$0xff]
        %v354 = vld [vmem:[%s259 + $0x188] sm:$0xff]
        %v355 = vld [vmem:[%s259 + $0x190] sm:$0xff]
        %v356 = vld [vmem:[%s259 + $0x198] sm:$0xff]
        %v357 = vld [vmem:[%s259 + $0x1a0] sm:$0xff]
        %v358 = vld [vmem:[%s259 + $0x1a8] sm:$0xff]
        %v359 = vld [vmem:[%s259 + $0x1b0] sm:$0xff]
        %v360 = vld [vmem:[%s259 + $0x1b8] sm:$0xff]
        %v361 = vld [vmem:[%s259 + $0x1c0] sm:$0xff]
        %v362 = vld [vmem:[%s259 + $0x1c8] sm:$0xff]
        %v363 = vld [vmem:[%s259 + $0x1d0] sm:$0xff]
        %v364 = vld [vmem:[%s259 + $0x1d8] sm:$0xff]
        %v365 = vld [vmem:[%s259 + $0x1e0] sm:$0xff]
        %v366 = vld [vmem:[%s259 + $0x1e8] sm:$0xff]
        %v367 = vld [vmem:[%s259 + $0x1f0] sm:$0xff]
        %v368 = vld [vmem:[%s259 + $0x1f8] sm:$0xff]
        %369 = vmatprep.subr.mxu0 0.0
        %370 = vmatpush1.msra.mxu0 %v305
        %371 = vmatprep.subr.mxu0 0.0
        %372 = vmatpush1.msra.mxu0 %v306
        %373 = vmatprep.subr.mxu0 0.0
        %374 = vmatpush1.msra.mxu0 %v307
        %375 = vmatprep.subr.mxu0 0.0
        %376 = vmatpush1.msra.mxu0 %v308
        %377 = vmatprep.subr.mxu0 0.0
        %378 = vmatpush1.msra.mxu0 %v309
        %379 = vmatprep.subr.mxu0 0.0
        %380 = vmatpush1.msra.mxu0 %v310
        %381 = vmatprep.subr.mxu0 0.0
        %382 = vmatpush1.msra.mxu0 %v311
        %383 = vmatprep.subr.mxu0 0.0
        %384 = vmatpush1.msra.mxu0 %v312
        %385 = vmatprep.subr.mxu0 0.0
        %386 = vmatpush1.msra.mxu0 %v313
        %387 = vmatprep.subr.mxu0 0.0
        %388 = vmatpush1.msra.mxu0 %v314
        %389 = vmatprep.subr.mxu0 0.0
        %390 = vmatpush1.msra.mxu0 %v315
        %391 = vmatprep.subr.mxu0 0.0
        %392 = vmatpush1.msra.mxu0 %v316
        %393 = vmatprep.subr.mxu0 0.0
        %394 = vmatpush1.msra.mxu0 %v317
        %395 = vmatprep.subr.mxu0 0.0
        %396 = vmatpush1.msra.mxu0 %v318
        %397 = vmatprep.subr.mxu0 0.0
        %398 = vmatpush1.msra.mxu0 %v319
        %399 = vmatprep.subr.mxu0 0.0
        %400 = vmatpush1.msra.mxu0 %v320
        %401 = vmatprep.subr.mxu0 0.0
        %402 = vmatpush1.msra.mxu0 %v321
        %403 = vmatprep.subr.mxu0 0.0
        %404 = vmatpush1.msra.mxu0 %v322
        %405 = vmatprep.subr.mxu0 0.0
        %406 = vmatpush1.msra.mxu0 %v323
        %407 = vmatprep.subr.mxu0 0.0
        %408 = vmatpush1.msra.mxu0 %v324
        %409 = vmatprep.subr.mxu0 0.0
        %410 = vmatpush1.msra.mxu0 %v325
        %411 = vmatprep.subr.mxu0 0.0
        %412 = vmatpush1.msra.mxu0 %v326
        %413 = vmatprep.subr.mxu0 0.0
        %414 = vmatpush1.msra.mxu0 %v327
        %415 = vmatprep.subr.mxu0 0.0
        %416 = vmatpush1.msra.mxu0 %v328
        %417 = vmatprep.subr.mxu0 0.0
        %418 = vmatpush1.msra.mxu0 %v329
        %419 = vmatprep.subr.mxu0 0.0
        %420 = vmatpush1.msra.mxu0 %v330
        %421 = vmatprep.subr.mxu0 0.0
        %422 = vmatpush1.msra.mxu0 %v331
        %423 = vmatprep.subr.mxu0 0.0
        %424 = vmatpush1.msra.mxu0 %v332
        %425 = vmatprep.subr.mxu0 0.0
        %426 = vmatpush1.msra.mxu0 %v333
        %427 = vmatprep.subr.mxu0 0.0
        %428 = vmatpush1.msra.mxu0 %v334
        %429 = vmatprep.subr.mxu0 0.0
        %430 = vmatpush1.msra.mxu0 %v335
        %431 = vmatprep.subr.mxu0 0.0
        %432 = vmatpush1.msra.mxu0 %v336
        %433 = vmatprep.mubr.f32.mxu0 %v302
        %434 = vmatmul.mubr.f32.gmra.mrb[0].mxu0 %v301
        %v435 = vpop.f32.mrb[0].mxu0
        %v436 = vadd.f32 0.0, %v435
        %v437 = vpop.f32.mrb[0].mxu0
        %438 = vdwg.mxu0
        %439 = vmatprep.subr.mxu0 0.0
        %440 = vmatpush1.msra.mxu0 %v337
        %441 = vmatprep.subr.mxu0 0.0
        %442 = vmatpush1.msra.mxu0 %v338
        %443 = vmatprep.subr.mxu0 0.0
        %444 = vmatpush1.msra.mxu0 %v339
        %445 = vmatprep.subr.mxu0 0.0
        %446 = vmatpush1.msra.mxu0 %v340
        %447 = vmatprep.subr.mxu0 0.0
        %448 = vmatpush1.msra.mxu0 %v341
        %449 = vmatprep.subr.mxu0 0.0
        %450 = vmatpush1.msra.mxu0 %v342
        %451 = vmatprep.subr.mxu0 0.0
        %452 = vmatpush1.msra.mxu0 %v343
        %453 = vmatprep.subr.mxu0 0.0
        %454 = vmatpush1.msra.mxu0 %v344
        %455 = vmatprep.subr.mxu0 0.0
        %456 = vmatpush1.msra.mxu0 %v345
        %457 = vmatprep.subr.mxu0 0.0
        %458 = vmatpush1.msra.mxu0 %v346
        %459 = vmatprep.subr.mxu0 0.0
        %460 = vmatpush1.msra.mxu0 %v347
        %461 = vmatprep.subr.mxu0 0.0
        %462 = vmatpush1.msra.mxu0 %v348
        %463 = vmatprep.subr.mxu0 0.0
        %464 = vmatpush1.msra.mxu0 %v349
        %465 = vmatprep.subr.mxu0 0.0
        %466 = vmatpush1.msra.mxu0 %v350
        %467 = vmatprep.subr.mxu0 0.0
        %468 = vmatpush1.msra.mxu0 %v351
        %469 = vmatprep.subr.mxu0 0.0
        %470 = vmatpush1.msra.mxu0 %v352
        %471 = vmatprep.subr.mxu0 0.0
        %472 = vmatpush1.msra.mxu0 %v353
        %473 = vmatprep.subr.mxu0 0.0
        %474 = vmatpush1.msra.mxu0 %v354
        %475 = vmatprep.subr.mxu0 0.0
        %476 = vmatpush1.msra.mxu0 %v355
        %477 = vmatprep.subr.mxu0 0.0
        %478 = vmatpush1.msra.mxu0 %v356
        %479 = vmatprep.subr.mxu0 0.0
        %480 = vmatpush1.msra.mxu0 %v357
        %481 = vmatprep.subr.mxu0 0.0
        %482 = vmatpush1.msra.mxu0 %v358
        %483 = vmatprep.subr.mxu0 0.0
        %484 = vmatpush1.msra.mxu0 %v359
        %485 = vmatprep.subr.mxu0 0.0
        %486 = vmatpush1.msra.mxu0 %v360
        %487 = vmatprep.subr.mxu0 0.0
        %488 = vmatpush1.msra.mxu0 %v361
        %489 = vmatprep.subr.mxu0 0.0
        %490 = vmatpush1.msra.mxu0 %v362
        %491 = vmatprep.subr.mxu0 0.0
        %492 = vmatpush1.msra.mxu0 %v363
        %493 = vmatprep.subr.mxu0 0.0
        %494 = vmatpush1.msra.mxu0 %v364
        %495 = vmatprep.subr.mxu0 0.0
        %496 = vmatpush1.msra.mxu0 %v365
        %497 = vmatprep.subr.mxu0 0.0
        %498 = vmatpush1.msra.mxu0 %v366
        %499 = vmatprep.subr.mxu0 0.0
        %500 = vmatpush1.msra.mxu0 %v367
        %501 = vmatprep.subr.mxu0 0.0
        %502 = vmatpush1.msra.mxu0 %v368
        %503 = vmatprep.mubr.f32.mxu0 %v304
        %504 = vmatmul.mubr.f32.gmra.mrb[0].mxu0 %v303
        %v505 = vpop.f32.mrb[0].mxu0
        %v506 = vadd.f32 %v436, %v505
        %v507 = vpop.f32.mrb[0].mxu0
        %508 = vdwg.mxu0
        %v509 = vadd.f32 %v300, %v506
        %510 = vst [vmem:[#allocation2] sm:$0xff] %v509
        %p511 = scmp.eq.s32.totalorder %s30, 1
        // Predicated region
        $region49: #{tpu_custom_call.1} parent=31 // pred_check
          %p512 = pneg %p511
        $region50: #{tpu_custom_call.1} parent=31 // pred_check_branch
          %514 = sbr.rel (%p512) target = $region52
        $region51: #{tpu_custom_call.1} parent=31 // pred_region
          %v515 = vld [vmem:[#allocation2] sm:$0xff]
          %v516 = vld [vmem:[%s2] sm:$0x1]
          %v518 = vlaneseq
          %v519 = vshrl.u32 %v518, 7
          %v520 = vsub.s32 0, %v519
          %v521 = vrot.slane %v516, %v520
          %v523 = vadd.f32 %v515, %v521
          %524 = vst [vmem:[#allocation8] sm:$0xff] %v523
          %s525 = smul.u32 %s29, 8
          %v526 = vlaneseq
          %v527 = vshrl.u32 %v526, 7
          %v528 = vstv %s525
          %v529 = vadd.s32 %v528, %v527
          %vm530 = vcmp.lt.s32.totalorder %v529, 2
          %v531 = vsel %vm530, 1, 0
          %vm532 = vcmp.eq.s32.totalorder %v531, 1
          %v533 = vsel %vm532, %v523, 0.0
          %v534 = vld [vmem:[#allocation9] sm:$0x1]
          %v535 = vrot.slane %v533, 4
          %v536 = vadd.f32 %v533, %v535
          %v537 = vrot.slane %v536, 2
          %v538 = vadd.f32 %v536, %v537
          %v539 = vrot.slane %v538, 1
          %v540 = vadd.f32 %v538, %v539
          %v541 = vadd.f32 %v534, %v540
          %542 = vst [vmem:[#allocation9] sm:$0x1] %v541
          %v543 = vld [vmem:[#allocation11] sm:$0x1]
          %v544 = vmul.f32 %v533, %v533
          %v545 = vrot.slane %v544, 4
          %v546 = vadd.f32 %v544, %v545
          %v547 = vrot.slane %v546, 2
          %v548 = vadd.f32 %v546, %v547
          %v549 = vrot.slane %v548, 1
          %v550 = vadd.f32 %v548, %v549
          %v551 = vadd.f32 %v543, %v550
          %552 = vst [vmem:[#allocation11] sm:$0x1] %v551
        $region52: #{tpu_custom_call.1} parent=31 // pred_fallthru
          _
        // Predicated region
        $region53: #{tpu_custom_call.1} parent=31 // pred_check
          %p553 = pneg %p130
        $region54: #{tpu_custom_call.1} parent=31 // pred_check_branch
          %555 = sbr.rel (%p553) target = $region56
        $region55: #{tpu_custom_call.1} parent=31 // pred_region
          %s557 = ssub.s32 128, 128
          %558 = vsyncadd [#allocation5], %s557
          %s559 = smul.addr %s29, 128
          %s560 = scalar_lea.hbm %s3, %s559
          %s562 = sshll.u32 [#allocation8], 4
          %s563 = int_to_ptr.vmem [resolvable:$true] %s562
          %565 = dma.vmem_to_hbm [thread:$0]  %s563, 128, %s560, [#allocation5]
        $region56: #{tpu_custom_call.1} parent=31 // pred_fallthru
          _
        // Predicated region
        $region57: #{tpu_custom_call.1} parent=31 // pred_check
          %p566 = pneg %p151
        $region58: #{tpu_custom_call.1} parent=31 // pred_check_branch
          %568 = sbr.rel (%p566) target = $region60
        $region59: #{tpu_custom_call.1} parent=31 // pred_region
          %s570 = ssub.s32 16, 16
          %571 = vsyncadd [#allocation10], %s570
          %s573 = sshll.u32 [#allocation9], 4
          %s574 = int_to_ptr.vmem [resolvable:$true] %s573
          %576 = dma.vmem_to_hbm [thread:$0]  %s574, 16, %s4, [#allocation10]
        $region60: #{tpu_custom_call.1} parent=31 // pred_fallthru
          _
        // Predicated region
        $region61: #{tpu_custom_call.1} parent=31 // pred_check
          %p577 = pneg %p172
        $region62: #{tpu_custom_call.1} parent=31 // pred_check_branch
          %579 = sbr.rel (%p577) target = $region64
        $region63: #{tpu_custom_call.1} parent=31 // pred_region
          %s581 = ssub.s32 16, 16
          %582 = vsyncadd [#allocation10], %s581
          %s584 = sshll.u32 [#allocation11], 4
          %s585 = int_to_ptr.vmem [resolvable:$true] %s584
          %587 = dma.vmem_to_hbm [thread:$0]  %s585, 16, %s5, [#allocation10]
        $region64: #{tpu_custom_call.1} parent=31 // pred_fallthru
          _
        // Predicated region
        $region65: #{tpu_custom_call.1} parent=31 // pred_check
          %p588 = pneg %p130
        $region66: #{tpu_custom_call.1} parent=31 // pred_check_branch
          %590 = sbr.rel (%p588) target = $region68
        $region67: #{tpu_custom_call.1} parent=31 // pred_region
          %591 = dma.done [#allocation5], 128
        $region68: #{tpu_custom_call.1} parent=31 // pred_fallthru
          _
        // Predicated region
        $region69: #{tpu_custom_call.1} parent=31 // pred_check
          %p592 = pneg %p151
        $region70: #{tpu_custom_call.1} parent=31 // pred_check_branch
          %594 = sbr.rel (%p592) target = $region72
        $region71: #{tpu_custom_call.1} parent=31 // pred_region
          %595 = dma.done [#allocation10], 16
        $region72: #{tpu_custom_call.1} parent=31 // pred_fallthru
          _
        // Predicated region
        $region73: #{tpu_custom_call.1} parent=31 // pred_check
          %p596 = pneg %p172
        $region74: #{tpu_custom_call.1} parent=31 // pred_check_branch
          %598 = sbr.rel (%p596) target = $region76
        $region75: #{tpu_custom_call.1} parent=31 // pred_region
          %599 = dma.done [#allocation10], 16
        $region76: #{tpu_custom_call.1} parent=31 // pred_fallthru
          _
      $region32: #{tpu_custom_call.1} parent=5 // pred_fallthru
        _
      %p600 = scmp.le.s32.totalorder 2, %s20
      // Predicated region
      $region77: #{tpu_custom_call.1} parent=5 // pred_check
        %p601 = pneg %p600
      $region78: #{tpu_custom_call.1} parent=5 // pred_check_branch
        %603 = sbr.rel (%p601) target = $region80
      $region79: #{tpu_custom_call.1} parent=5 // pred_region
        %s604 = ssub.s32 %s20, 2
      $region80: #{tpu_custom_call.1} parent=5 // pred_fallthru
        _
    $region6: #{tpu_custom_call.1} parent=1 // loop_footer
      %s24 = sadd.s32 1, %s20
    $region7: #{tpu_custom_call.1} parent=1 // loop_footer_branch
      %19 = sbr.rel target = $region3
    $region8: #{tpu_custom_call.1} parent=1 // loop_exit
      _
    %605 = vsyncpa [#allocation4], 1
    %s606 = scalar_lea.sflag [#allocation4], 1
    %607 = vsyncpa %s606, 1
    %608 = vsyncpa [#allocation7], 1
    %s609 = scalar_lea.sflag [#allocation7], 1
    %610 = vsyncpa %s609, 1
    %611 = vsyncpa [#allocation5], 1
    %s612 = scalar_lea.sflag [#allocation5], 1
    %613 = vsyncpa %s612, 1
    %614 = vsyncpa [#allocation10], 1

</llo_original>
